<compile_context>
chip_gen: v7x
topology: tpu7x:2x2x1
jax: 0.10.0
libtpu: 0.0.40
codegen_flags: <defaults>
</compile_context>

<pallas_src>
import functools

import jax
import jax.numpy as jnp
from jax import lax
from jax.experimental import pallas as pl
from jax.experimental.pallas import tpu as pltpu

LANES = 128
BLOCK_BYTES = 2 * 1024 * 1024      # per input, per pipeline buffer
CHUNK_ROWS = 256                   # (256,128) f32 chunk = 32 vregs per operand
ACC_ROWS = 8                       # (8,128) vreg-shaped accumulators
VMEM_LIMIT_BYTES = 32 * 1024 * 1024


@functools.lru_cache(maxsize=1)
def _num_tensorcores():
    """Number of TensorCores the 'parallel' leading grid axis can shard over."""
    try:
        info = pltpu.get_tpu_info()
        for attr in ("num_cores", "core_count", "num_tensorcores",
                     "tensorcore_count", "cores_per_chip", "num_cores_per_chip"):
            v = getattr(info, attr, None)
            if isinstance(v, int) and v >= 1:
                return max(1, min(int(v), 4))
    except Exception:
        pass
    try:
        kind = jax.devices()[0].device_kind.lower()
        if ("v7" in kind) or ("v4" in kind) or ("v5p" in kind) or ("v5 p" in kind):
            return 2
    except Exception:
        pass
    return 1


def _block_rows_for(dtype):
    """Rows per block so each input buffer is ~BLOCK_BYTES, any dtype width."""
    itemsize = jnp.dtype(dtype).itemsize
    rows = BLOCK_BYTES // (LANES * itemsize)
    # Keep it a multiple of CHUNK_ROWS (and therefore of 8 sublanes).
    rows = max(CHUNK_ROWS, (rows // CHUNK_ROWS) * CHUNK_ROWS)
    return rows


def _smooth_l1_elementwise(p, t):
    d = p.astype(jnp.float32) - t.astype(jnp.float32)
    ad = jnp.abs(d)
    # PyTorch SmoothL1 (beta=1.0): 0.5*d^2 if |d| < 1 else |d| - 0.5
    return jnp.where(ad < 1.0, 0.5 * d * d, ad - 0.5)


def _single_block_kernel(p_ref, t_ref, sum_ref, max_ref):
    """Tiny-input path: whole (rows,128) slab in one block, one reduce."""
    loss = _smooth_l1_elementwise(p_ref[...], t_ref[...])
    sum_ref[...] = jnp.sum(loss, keepdims=True)
    max_ref[...] = jnp.max(loss, keepdims=True)


def _tiled_kernel(p_ref, t_ref, sum_ref, max_ref, sum_acc, max_acc, *,
                  rows, block_rows, tiles_per_core, any_tail):
    """Grid = (cores, tiles_per_core). Chunked accumulation into (8,128) vreg
    scratch; the cross-lane reduce to (1,1) runs once per core at the end."""
    c = pl.program_id(0)
    i = pl.program_id(1)
    tile = c * tiles_per_core + i

    @pl.when(i == 0)
    def _init():
        sum_acc[...] = jnp.zeros_like(sum_acc)
        # loss >= 0, so 0 is a valid identity for the running max.
        max_acc[...] = jnp.zeros_like(max_acc)

    n_chunks = block_rows // CHUNK_ROWS

    def accumulate(mask_rows):
        if mask_rows:
            # Hoisted out of the loop: JAX does not CSE broadcast_in_dim.
            row_ids = lax.broadcasted_iota(jnp.int32, (CHUNK_ROWS, LANES), 0)
            tile_base = tile * block_rows

        def body(j, carry):
            r0 = pl.multiple_of(j * CHUNK_ROWS, CHUNK_ROWS)
            p = p_ref[pl.ds(r0, CHUNK_ROWS), :]
            t = t_ref[pl.ds(r0, CHUNK_ROWS), :]
            loss = _smooth_l1_elementwise(p, t)
            if mask_rows:
                # Mask rows past the real end of the array. jnp.where lowers
                # to a select, so NaN/Inf garbage never propagates.
                global_rows = tile_base + r0 + row_ids
                loss = jnp.where(global_rows < rows, loss, 0.0)
            # (CHUNK_ROWS,128) -> (CHUNK_ROWS/8, 8, 128); reduce leading axis:
            # pure vreg-wise VPU adds/maxes, no per-step XLU or masked stores.
            folded = loss.reshape(CHUNK_ROWS // ACC_ROWS, ACC_ROWS, LANES)
            sum_acc[...] += jnp.sum(folded, axis=0)
            max_acc[...] = jnp.maximum(max_acc[...], jnp.max(folded, axis=0))
            return carry

        lax.fori_loop(0, n_chunks, body, 0)

    if any_tail:
        # Runtime gate: only the tile overlapping / past the end of the data
        # pays the per-element masking cost. Overhang tiles (clamped duplicate
        # DMAs on the multi-core split) are fully masked to zero.
        is_tail = (tile + 1) * block_rows > rows

        @pl.when(jnp.logical_not(is_tail))
        def _plain():
            accumulate(False)

        @pl.when(is_tail)
        def _masked():
            accumulate(True)
    else:
        accumulate(False)

    @pl.when(i == pl.num_programs(1) - 1)
    def _finalize():
        sum_ref[...] = jnp.sum(sum_acc[...], keepdims=True)
        max_ref[...] = jnp.max(max_acc[...], keepdims=True)


def _to_lane_slab(x):
    """Flatten row-major and view as (rows, 128). Only pads (one HBM copy)
    when numel is not a multiple of 128; zero padding yields loss == 0."""
    flat = x.reshape(-1)
    rem = flat.shape[0] % LANES
    if rem:
        # TODO(synk): handle the sub-128 ragged lane tail in-kernel to avoid this copy.
        flat = jnp.pad(flat, (0, LANES - rem))
    return flat.reshape(-1, LANES)


@jax.jit
def smooth_l1_reduce(pred, target):
    """Returns (mean_loss, max_elementwise_loss) as f32 scalars."""
    assert pred.shape == target.shape, "pred/target shapes must match"
    n = pred.size
    p2 = _to_lane_slab(pred)
    t2 = _to_lane_slab(target)
    rows = p2.shape[0]
    block_rows = _block_rows_for(pred.dtype)

    cost = pl.CostEstimate(
        flops=7 * n,
        transcendentals=0,
        bytes_accessed=n * (pred.dtype.itemsize + target.dtype.itemsize) + 16,
    )
    cparams_common = dict(vmem_limit_bytes=VMEM_LIMIT_BYTES)

    if rows <= block_rows:
        # Tiny input: single full-array block, no grid pipeline / accumulators.
        sum_out, max_out = pl.pallas_call(
            _single_block_kernel,
            out_shape=(jax.ShapeDtypeStruct((1, 1), jnp.float32),
                       jax.ShapeDtypeStruct((1, 1), jnp.float32)),
            grid=(1,),
            in_specs=[pl.BlockSpec((rows, LANES), lambda i: (0, 0)),
                      pl.BlockSpec((rows, LANES), lambda i: (0, 0))],
            out_specs=(pl.BlockSpec((1, 1), lambda i: (0, 0)),
                       pl.BlockSpec((1, 1), lambda i: (0, 0))),
            compiler_params=pltpu.CompilerParams(**cparams_common),
            cost_estimate=cost,
        )(p2, t2)
    else:
        num_tiles = pl.cdiv(rows, block_rows)
        cores = min(_num_tensorcores(), num_tiles)    # 1 on v5e/v6e, 2 on v7x
        tiles_per_core = pl.cdiv(num_tiles, cores)
        # True iff some tile overhangs the data (ragged last tile, or a
        # clamped duplicate tile when cores does not divide num_tiles).
        any_tail = (cores * tiles_per_core * block_rows != rows)

        def in_map(c, i):
            # Clamp so the DMA never targets a block fully outside the array;
            # duplicated / overhanging rows are masked to zero in the kernel.
            return (jnp.minimum(c * tiles_per_core + i, num_tiles - 1), 0)

        kernel = functools.partial(
            _tiled_kernel,
            rows=rows,
            block_rows=block_rows,
            tiles_per_core=tiles_per_core,
            any_tail=any_tail,
        )

        sum_out, max_out = pl.pallas_call(
            kernel,
            out_shape=(jax.ShapeDtypeStruct((cores, 1), jnp.float32),
                       jax.ShapeDtypeStruct((cores, 1), jnp.float32)),
            grid_spec=pltpu.PrefetchScalarGridSpec(
                num_scalar_prefetch=0,
                grid=(cores, tiles_per_core),
                in_specs=[pl.BlockSpec((block_rows, LANES), in_map),
                          pl.BlockSpec((block_rows, LANES), in_map)],
                out_specs=[pl.BlockSpec((1, 1), lambda c, i: (c, 0)),
                           pl.BlockSpec((1, 1), lambda c, i: (c, 0))],
                scratch_shapes=[pltpu.VMEM((ACC_ROWS, LANES), jnp.float32),
                                pltpu.VMEM((ACC_ROWS, LANES), jnp.float32)],
            ),
            compiler_params=pltpu.CompilerParams(
                dimension_semantics=("parallel", "arbitrary"),
                **cparams_common,
            ),
            cost_estimate=cost,
        )(p2, t2)

    mean_loss = jnp.sum(sum_out) / jnp.float32(n)
    max_loss = jnp.max(max_out)
    return mean_loss, max_loss


class CustomSmoothL1Loss:
    """Mirrors the PyTorch module: keeps python-side max_loss state."""

    def __init__(self):
        self.max_loss = 0.0

    def __call__(self, pred, target):
        mean_loss, current_max = smooth_l1_reduce(pred, target)
        # Matches torch's .item(): forces a host sync for the running max.
        self.max_loss = max(self.max_loss, float(current_max))
        return mean_loss


if __name__ == "__main__":
    key = jax.random.PRNGKey(0)
    k1, k2, k3, k4 = jax.random.split(key, 4)

    def _ref(pred, target):
        d = pred.astype(jnp.float32) - target.astype(jnp.float32)
        ad = jnp.abs(d)
        e = jnp.where(ad < 1.0, 0.5 * d * d, ad - 0.5)
        return jnp.mean(e), jnp.max(e)

    # 1) small NCHW input (exercises the single-block fast path)
    pred = jax.random.normal(k1, (2, 4, 16, 16), dtype=jnp.float32)
    target = jax.random.normal(k2, (2, 4, 16, 16), dtype=jnp.float32)
    loss_fn = CustomSmoothL1Loss()
    mean_loss = loss_fn(pred, target)
    jax.block_until_ready(mean_loss)
    ref_mean, ref_max = _ref(pred, target)
    assert jnp.allclose(mean_loss, ref_mean, rtol=1e-5, atol=1e-6), (mean_loss, ref_mean)
    assert abs(loss_fn.max_loss - float(ref_max)) < 1e-5, (loss_fn.max_loss, float(ref_max))

    # 2) larger input (exercises the tiled path with a ragged, runtime-masked tail tile)
    pred2 = jax.random.normal(k3, (2, 4, 320, 320), dtype=jnp.float32)
    target2 = jax.random.normal(k4, (2, 4, 320, 320), dtype=jnp.float32)
    mean2, max2 = smooth_l1_reduce(pred2, target2)
    jax.block_until_ready(mean2)
    ref_mean2, ref_max2 = _ref(pred2, target2)
    assert jnp.allclose(mean2, ref_mean2, rtol=1e-5, atol=1e-6), (mean2, ref_mean2)
    assert jnp.allclose(max2, ref_max2, rtol=1e-5, atol=1e-6), (max2, ref_max2)

    print("KERNEL_OK")
</pallas_src>

<mosaic_0001>
module attributes {stable_mosaic.version = 11 : i64} {
  func.func @_single_block_kernel(%arg0: i32, %arg1: memref<16x128xf32, #tpu.memory_space<vmem>>, %arg2: memref<16x128xf32, #tpu.memory_space<vmem>>, %arg3: memref<1x1xf32, #tpu.memory_space<vmem>>, %arg4: memref<1x1xf32, #tpu.memory_space<vmem>>) attributes {dimension_semantics = [#tpu.dimension_semantics<arbitrary>], iteration_bounds = array<i64: 1>, scalar_prefetch = 0 : i64, scratch_operands = 0 : i64, tpu.core_type = #tpu.core_type<tc>, window_params = [{pipeline_mode = #tpu.pipeline_mode<synchronous>, transform_indices = @transform_0, window_bounds = array<i64: 16, 128>}, {pipeline_mode = #tpu.pipeline_mode<synchronous>, transform_indices = @transform_1, window_bounds = array<i64: 16, 128>}, {pipeline_mode = #tpu.pipeline_mode<synchronous>, transform_indices = @transform_2, window_bounds = array<i64: 1, 1>}, {pipeline_mode = #tpu.pipeline_mode<synchronous>, transform_indices = @transform_3, window_bounds = array<i64: 1, 1>}]} {
    %c0 = arith.constant 0 : index
    %c0_0 = arith.constant 0 : index
    %0 = vector.load %arg1[%c0, %c0_0] : memref<16x128xf32, #tpu.memory_space<vmem>>, vector<16x128xf32>
    %c0_1 = arith.constant 0 : index
    %c0_2 = arith.constant 0 : index
    %1 = vector.load %arg2[%c0_1, %c0_2] : memref<16x128xf32, #tpu.memory_space<vmem>>, vector<16x128xf32>
    %2 = arith.subf %0, %1 : vector<16x128xf32>
    %3 = math.absf %2 : vector<16x128xf32>
    %cst = arith.constant 1.000000e+00 : f32
    %4 = vector.broadcast %cst : f32 to vector<16x128xf32>
    %5 = arith.cmpf olt, %3, %4 : vector<16x128xf32>
    %cst_3 = arith.constant 5.000000e-01 : f32
    %6 = vector.broadcast %cst_3 : f32 to vector<16x128xf32>
    %7 = arith.mulf %6, %2 : vector<16x128xf32>
    %8 = arith.mulf %7, %2 : vector<16x128xf32>
    %cst_4 = arith.constant 5.000000e-01 : f32
    %9 = vector.broadcast %cst_4 : f32 to vector<16x128xf32>
    %10 = arith.subf %3, %9 : vector<16x128xf32>
    %11 = arith.select %5, %8, %10 : vector<16x128xi1>, vector<16x128xf32>
    %12 = vector.shape_cast %11 : vector<16x128xf32> to vector<1x16x128xf32>
    %cst_5 = arith.constant dense<0.000000e+00> : vector<1xf32>
    %13 = vector.multi_reduction <add>, %12, %cst_5 [1, 2] : vector<1x16x128xf32> to vector<1xf32>
    %14 = vector.shape_cast %13 : vector<1xf32> to vector<1x1x1xf32>
    %15 = vector.extract %14[0, 0, 0] : f32 from vector<1x1x1xf32>
    %16 = vector.broadcast %15 : f32 to vector<1x1xf32>
    %c0_6 = arith.constant 0 : index
    %c0_7 = arith.constant 0 : index
    %17 = vector.load %arg3[%c0_6, %c0_7] : memref<1x1xf32, #tpu.memory_space<vmem>>, vector<1x1xf32>
    tpu.vector_store %arg3[%c0_6, %c0_7], %16 {strides = array<i32>} : memref<1x1xf32, #tpu.memory_space<vmem>>, vector<1x1xf32>,
    %18 = vector.shape_cast %11 : vector<16x128xf32> to vector<1x16x128xf32>
    %cst_8 = arith.constant dense<0xFF800000> : vector<1xf32>
    %19 = vector.multi_reduction <maximumf>, %18, %cst_8 [1, 2] : vector<1x16x128xf32> to vector<1xf32>
    %20 = vector.shape_cast %19 : vector<1xf32> to vector<1x1x1xf32>
    %21 = vector.extract %20[0, 0, 0] : f32 from vector<1x1x1xf32>
    %22 = vector.broadcast %21 : f32 to vector<1x1xf32>
    %c0_9 = arith.constant 0 : index
    %c0_10 = arith.constant 0 : index
    %23 = vector.load %arg4[%c0_9, %c0_10] : memref<1x1xf32, #tpu.memory_space<vmem>>, vector<1x1xf32>
    tpu.vector_store %arg4[%c0_9, %c0_10], %22 {strides = array<i32>} : memref<1x1xf32, #tpu.memory_space<vmem>>, vector<1x1xf32>,
    return
  }
  func.func @transform_0(%arg0: i32) -> (i32, i32) {
    %c0_i32 = arith.constant 0 : i32
    %c0_i32_0 = arith.constant 0 : i32
    %c0_i32_1 = arith.constant 0 : i32
    return %c0_i32, %c0_i32_0 : i32, i32
  }
  func.func @transform_1(%arg0: i32) -> (i32, i32) {
    %c0_i32 = arith.constant 0 : i32
    %c0_i32_0 = arith.constant 0 : i32
    %c0_i32_1 = arith.constant 0 : i32
    return %c0_i32, %c0_i32_0 : i32, i32
  }
  func.func @transform_2(%arg0: i32) -> (i32, i32) {
    %c0_i32 = arith.constant 0 : i32
    %c0_i32_0 = arith.constant 0 : i32
    %c0_i32_1 = arith.constant 0 : i32
    return %c0_i32, %c0_i32_0 : i32, i32
  }
  func.func @transform_3(%arg0: i32) -> (i32, i32) {
    %c0_i32 = arith.constant 0 : i32
    %c0_i32_0 = arith.constant 0 : i32
    %c0_i32_1 = arith.constant 0 : i32
    return %c0_i32, %c0_i32_0 : i32, i32
  }
}

</mosaic_0001>

<llo_original>
// kernel: smooth_l1_reduce.1
$region0: #{smooth_l1_reduce.1}
  #allocation0 [shape = 'u32[]', space=smem, size = 0x4, offset = 0x4, fixed_abs, tag = 'smem constant byte address 0x4 - core index']
  #allocation1 [shape = 'u32[144,128]{1,0:T(1,128)}', space=vmem, size = 0x12000, scoped, tag = 'internal scratch']
  %s0 = inlined_call_operand.vmem [shape: f32[16,128], index: 0, kind: input, shape index: {}]
  %s1 = inlined_call_operand.vmem [shape: f32[16,128], index: 1, kind: input, shape index: {}]
  %s2 = inlined_call_operand.hbm [shape: f32[1,1], index: 2, kind: output, shape index: {0}]
  %s3 = inlined_call_operand.hbm [shape: f32[1,1], index: 3, kind: output, shape index: {1}]
  %4 = xla_tuple %s2, %s3
  %s5 = sld [smem:[#allocation0]]
  $region26: #{smooth_l1_reduce.1} parent=0
    _
  %s7 = ssub.s32 1, %s5
  %s8 = scalar_select 0, %s7, %s5
  $region1: #{smooth_l1_reduce.1} parent=0
    #allocation2 [shape = 'u8[512]{0}', space=vmem, size = 0x400, scoped, tag = 'output window, operand 0, single buffered']
    #allocation3 [shape = 's32[1]{0}', space=sflag, size = 0x4, scoped, tag = 'scoped memory for smooth_l1_reduce.1']
    #allocation4 [shape = 'u8[512]{0}', space=vmem, size = 0x400, scoped, tag = 'output window, operand 1, single buffered']
    #allocation5 [shape = 's32[1]{0}', space=sflag, size = 0x4, scoped, tag = 'scoped memory for smooth_l1_reduce.1']
    %9 = vsyncpa [#allocation3], 0
    %10 = vsyncpa [#allocation5], 0
    // Predicated region
    $region2: #{smooth_l1_reduce.1} parent=1 // pred_check
      _
    $region3: #{smooth_l1_reduce.1} parent=1 // pred_check_branch
      %12 = sbr.rel (0) target = $region5
    $region4: #{smooth_l1_reduce.1} parent=1 // pred_region
      _
    $region5: #{smooth_l1_reduce.1} parent=1 // pred_fallthru
      _
    // Predicated region
    $region6: #{smooth_l1_reduce.1} parent=1 // pred_check
      _
    $region7: #{smooth_l1_reduce.1} parent=1 // pred_check_branch
      %14 = sbr.rel (0) target = $region9
    $region8: #{smooth_l1_reduce.1} parent=1 // pred_region
      _
    $region9: #{smooth_l1_reduce.1} parent=1 // pred_fallthru
      _
    %v15 = vld [vmem:[%s0] sm:$0xff]
    %v16 = vld [vmem:[%s0 + $0x8] sm:$0xff]
    %v17 = vld [vmem:[%s1] sm:$0xff]
    %v18 = vld [vmem:[%s1 + $0x8] sm:$0xff]
    %v19 = vsub.f32 %v15, %v17
    %v20 = vsub.f32 %v16, %v18
    %v21 = vand.u32 2147483647, %v19
    %v22 = vand.u32 2147483647, %v20
    %vm23 = vcmp.lt.f32.partialorder %v21, 1.0
    %vm24 = vcmp.lt.f32.partialorder %v22, 1.0
    %v25 = vmul.f32 %v19, 0.5
    %v26 = vmul.f32 %v20, 0.5
    %v27 = vmul.f32 %v25, %v19
    %v28 = vmul.f32 %v26, %v20
    %v29 = vsub.f32 %v21, 0.5
    %v30 = vsub.f32 %v22, 0.5
    %v31 = vsel %vm23, %v27, %v29
    %v32 = vsel %vm24, %v28, %v30
    %v33 = vadd.f32 %v31, %v32
    %34 = vadd.xlane.f32.xlu0 %v33
    %v35 = vpop.xlane.xlu0 %34
    %v36 = vrot.slane %v35, 4
    %v37 = vadd.f32 %v35, %v36
    %v38 = vrot.slane %v37, 2
    %v39 = vadd.f32 %v37, %v38
    %v40 = vrot.slane %v39, 1
    %v41 = vadd.f32 %v39, %v40
    %s42 = vtos %v41
    %v43 = vstv %s42
    %vm44 = vcmask 0
    %45 = vst.msk [vmem:[#allocation2] sm:$0x1] %vm44, %v43
    %v46 = vmax.f32 %v31, %v32
    %47 = vmax.xlane.f32.xlu0 %v46
    %v48 = vpop.xlane.xlu0 %47
    %v49 = vrot.slane %v48, 4
    %v50 = vmax.f32 %v48, %v49
    %v51 = vrot.slane %v50, 2
    %v52 = vmax.f32 %v50, %v51
    %v53 = vrot.slane %v52, 1
    %v54 = vmax.f32 %v52, %v53
    %s55 = vtos %v54
    %v56 = vstv %s55
    %57 = vst.msk [vmem:[#allocation4] sm:$0x1] %vm44, %v56
    // Predicated region
    $region10: #{smooth_l1_reduce.1} parent=1 // pred_check
      _
    $region11: #{smooth_l1_reduce.1} parent=1 // pred_check_branch
      %59 = sbr.rel (0) target = $region13
    $region12: #{smooth_l1_reduce.1} parent=1 // pred_region
      %s61 = ssub.s32 16, 16
      %62 = vsyncadd [#allocation3], %s61
      %s64 = sshll.u32 [#allocation2], 4
      %s65 = int_to_ptr.vmem [resolvable:$true] %s64
      %67 = dma.vmem_to_hbm [thread:$0]  %s65, 16, %s2, [#allocation3]
    $region13: #{smooth_l1_reduce.1} parent=1 // pred_fallthru
      _
    // Predicated region
    $region14: #{smooth_l1_reduce.1} parent=1 // pred_check
      _
    $region15: #{smooth_l1_reduce.1} parent=1 // pred_check_branch
      %69 = sbr.rel (0) target = $region17
    $region16: #{smooth_l1_reduce.1} parent=1 // pred_region
      %s71 = ssub.s32 16, 16
      %72 = vsyncadd [#allocation5], %s71
      %s74 = sshll.u32 [#allocation4], 4
      %s75 = int_to_ptr.vmem [resolvable:$true] %s74
      %77 = dma.vmem_to_hbm [thread:$0]  %s75, 16, %s3, [#allocation5]
    $region17: #{smooth_l1_reduce.1} parent=1 // pred_fallthru
      _
    // Predicated region
    $region18: #{smooth_l1_reduce.1} parent=1 // pred_check
      _
    $region19: #{smooth_l1_reduce.1} parent=1 // pred_check_branch
      %79 = sbr.rel (0) target = $region21
    $region20: #{smooth_l1_reduce.1} parent=1 // pred_region
      %80 = dma.done [#allocation3], 16
    $region21: #{smooth_l1_reduce.1} parent=1 // pred_fallthru
      _
    // Predicated region
    $region22: #{smooth_l1_reduce.1} parent=1 // pred_check
      _
    $region23: #{smooth_l1_reduce.1} parent=1 // pred_check_branch
      %82 = sbr.rel (0) target = $region25
    $region24: #{smooth_l1_reduce.1} parent=1 // pred_region
      %83 = dma.done [#allocation5], 16
    $region25: #{smooth_l1_reduce.1} parent=1 // pred_fallthru
      _
    %84 = vsyncpa [#allocation3], 1
    %85 = vsyncpa [#allocation5], 1

</llo_original>
